<compile_context>
chip_gen: v7x
topology: tpu7x:2x2x1
jax: 0.10.0
libtpu: 0.0.40
codegen_flags: <defaults>
</compile_context>

<pallas_src>
import jax
import jax.numpy as jnp
from jax import lax
from jax.experimental import pallas as pl
from jax.experimental.pallas import tpu as pltpu

_SUBLANE = 8
_BF16_WIDTH_THRESHOLD = 256


def _round_up(n, m):
    return (n + m - 1) // m * m


# ----------------------------- in-kernel helpers -----------------------------
def _apply_act(y, activation):
    if activation == "relu":
        return jnp.maximum(y, 0.0)
    if activation == "sigmoid":
        return jax.nn.sigmoid(y)               # recip/exp go to EUP
    if activation == "tanh":
        return jnp.tanh(y)                      # EUP
    if activation == "softplus":
        return jnp.logaddexp(0.0, y)            # overflow-safe softplus
    if activation == "leaky_relu":
        return jnp.where(y >= 0.0, y, 0.01 * y)
    raise ValueError(f"unknown activation {activation!r}")


def _matmul_nt(x, w):
    # y = x @ w.T with PyTorch-layout [out, in] weights: contract x dim 1 with
    # w dim 1 so the weight tile feeds the MXU directly (no in-kernel
    # transpose / XLU relayout).  Always accumulate in f32.
    return lax.dot_general(
        x, w,
        dimension_numbers=(((1,), (1,)), ((), ())),
        preferred_element_type=jnp.float32,
    )


def _make_fused_kernel(n_layers, activation, mxu_dtype):
    """One fused kernel for the whole dense stack (BBB layers already
    materialized into plain (W, b) pairs by the wrapper)."""

    def kernel(*refs):
        x_ref, o_ref = refs[0], refs[-1]
        prefs = refs[1:-1]                      # [W0, b0, W1, b1, ...]
        h = x_ref[...].astype(jnp.float32)
        for li in range(n_layers):
            w = prefs[2 * li][...]
            b = prefs[2 * li + 1][...]          # (1, out) -> broadcasts
            y = _matmul_nt(h.astype(mxu_dtype), w.astype(mxu_dtype)) + b
            if li < n_layers - 1:               # nonlinearity except last layer
                y = _apply_act(y, activation)
            h = y
        o_ref[...] = h.astype(o_ref.dtype)

    return kernel


# ----------------------------- parameter prep --------------------------------
def prepare_params(params, bnn_layer_id, *, mxu_dtype=None):
    """Materialize per-layer effective (W, b) ONCE (per BBB eps sample).

    Hoists the BBB softplus reparameterization and all padding / dtype casts
    out of the forward hot path (plain XLA, before any pallas_call), so
    repeated forwards with the same eps sample reuse the prepared arrays.

    params: list of dicts, either {'kind':'dense','W','b'} or
            {'kind':'bbb','w_mu','w_rho','w_eps','b_mu','b_rho','b_eps'}.
    Returns (weights, biases, mxu_dtype); weights[i] is [out, in],
    biases[i] is [1, out] f32.
    """
    if 0 in bnn_layer_id:
        raise ValueError("layer 0 is always a plain nn.Linear in MLP_BBB")
    for li, p in enumerate(params):
        expected = "bbb" if li in bnn_layer_id else "dense"
        if p["kind"] != expected:
            raise ValueError(
                f"layer {li}: kind {p['kind']!r} disagrees with bnn_layer_id")

    weights, biases = [], []
    for p in params:
        if p["kind"] == "dense":
            w = p["W"].astype(jnp.float32)
            b = p["b"].astype(jnp.float32)
        else:  # Bayes-by-backprop reparameterized linear
            w = (p["w_mu"] + jnp.logaddexp(0.0, p["w_rho"]) * p["w_eps"]
                 ).astype(jnp.float32)
            b = (p["b_mu"] + jnp.logaddexp(0.0, p["b_rho"]) * p["b_eps"]
                 ).astype(jnp.float32)
        weights.append(w)
        biases.append(b.reshape(1, -1))

    if mxu_dtype is None:
        widths = [weights[0].shape[1]] + [w.shape[0] for w in weights]
        mxu_dtype = (jnp.bfloat16 if max(widths) >= _BF16_WIDTH_THRESHOLD
                     else jnp.float32)
    # Pre-cast weights to the MXU operand dtype (halves weight DMA/VMEM when
    # bf16); biases + accumulation + activation math stay f32.
    weights = [w.astype(mxu_dtype) for w in weights]
    return weights, biases, mxu_dtype


# ----------------------------- forward wrapper --------------------------------
def mlp_bbb_forward(x, weights, biases, nonlinearity, *, mxu_dtype=None):
    """Mirrors MLP_BBB.forward: nonlinearity after every layer except the last."""
    f32 = jnp.float32
    batch, in_dim = x.shape
    n_layers = len(weights)
    assert weights[0].shape[1] == in_dim, "x feature dim != first layer in_dim"
    out_dim = weights[-1].shape[0]
    if mxu_dtype is None:
        mxu_dtype = weights[0].dtype

    # Batch tiling: single 8-row-aligned tile at tiny batch, 256/512-row tiles
    # at large batch (amortizes ~0.35us/step overhead, longer MXU LHS streams).
    if batch <= 128:
        tb = _round_up(batch, _SUBLANE)
    elif batch <= 1024:
        tb = 256
    else:
        tb = 512
    batch_p = _round_up(batch, tb)
    grid = (batch_p // tb,)
    # TODO(synk): on v7x a single-step grid at tiny batch leaves the second
    # TensorCore idle; split the tile in two there if small-batch latency matters.

    x_p = x.astype(f32)
    if batch_p != batch:
        x_p = jnp.pad(x_p, ((0, batch_p - batch), (0, 0)))  # extra rows sliced off

    # Feature dims are NOT padded: block last dims equal the full array dims
    # (legal per the (8,128) rule), so no 8x padded x reads, no 16x padded
    # output writeback, and no padded-column correctness subtleties.
    flat_inputs = [x_p]
    in_specs = [pl.BlockSpec((tb, in_dim), lambda i: (i, 0))]
    # Grid-invariant weights/biases: Pallas fetches them once; single-buffer
    # them so the default double buffer doesn't double resident VMEM.
    for w, b in zip(weights, biases):
        flat_inputs += [w, b]
        in_specs.append(pl.BlockSpec(w.shape, lambda i: (0, 0),
                                     pipeline_mode=pl.Buffered(1)))
        in_specs.append(pl.BlockSpec(b.shape, lambda i: (0, 0),
                                     pipeline_mode=pl.Buffered(1)))
    out_specs = pl.BlockSpec((tb, out_dim), lambda i: (i, 0))

    # TODO(synk): if layer widths grow past ~1-2K, tile weight matrices over N
    # (and K with a VMEM accumulator + pl.when init/finalize) instead of
    # whole-matrix blocks, and set vmem_limit_bytes explicitly.
    kernel = _make_fused_kernel(n_layers, nonlinearity, mxu_dtype)
    out_p = pl.pallas_call(
        kernel,
        out_shape=jax.ShapeDtypeStruct((batch_p, out_dim), f32),
        grid=grid,
        in_specs=in_specs,
        out_specs=out_specs,
        compiler_params=pltpu.CompilerParams(
            dimension_semantics=("parallel",)),
    )(*flat_inputs)
    return out_p[:batch]


# TODO(synk): log_prior / log_post / sample_elbo (loss-side bookkeeping) are
# not part of the forward hot path and are left in plain JAX, outside the kernel.


# ----------------------------- reference (pure jnp) ---------------------------
def _ref_forward(x, params, nonlinearity):
    acts = {"relu": lambda v: jnp.maximum(v, 0.0),
            "tanh": jnp.tanh,
            "sigmoid": jax.nn.sigmoid,
            "softplus": lambda v: jnp.logaddexp(0.0, v),
            "leaky_relu": lambda v: jnp.where(v >= 0, v, 0.01 * v)}
    n = len(params)
    h = x
    for i, p in enumerate(params):
        if p["kind"] == "dense":
            w, b = p["W"], p["b"]
        else:
            w = p["w_mu"] + jnp.logaddexp(0.0, p["w_rho"]) * p["w_eps"]
            b = p["b_mu"] + jnp.logaddexp(0.0, p["b_rho"]) * p["b_eps"]
        h = h @ w.T + b
        if i < n - 1:
            h = acts[nonlinearity](h)
    return h


# ----------------------------- main -------------------------------------------
if __name__ == "__main__":
    # MLP_BBB(input_dim=16, layer_wid=[32, 32, 8], bnn_layer_id=[1], 'relu')
    # -> fc_layers = [Linear(16,32), Linear_BBB(32,32), Linear(32,8)]
    input_dim = 16
    layer_wid = [32, 32, 8]
    bnn_layer_id = [1]
    nonlinearity = "relu"
    batch = 8

    key = jax.random.PRNGKey(0)
    keys = jax.random.split(key, 16)

    def uni(k, shape, lo, hi):
        return jax.random.uniform(k, shape, jnp.float32, lo, hi)

    params = []
    # layer 0: plain nn.Linear(input_dim, layer_wid[0])
    bound0 = 1.0 / jnp.sqrt(input_dim)
    params.append({
        "kind": "dense",
        "W": uni(keys[0], (layer_wid[0], input_dim), -bound0, bound0),
        "b": uni(keys[1], (layer_wid[0],), -bound0, bound0),
    })
    # layer 1: Linear_BBB(layer_wid[0], layer_wid[1])  (1 in bnn_layer_id)
    params.append({
        "kind": "bbb",
        "w_mu":  uni(keys[2], (layer_wid[1], layer_wid[0]), -0.05, 0.05),
        "w_rho": uni(keys[3], (layer_wid[1], layer_wid[0]), -2.0, -1.0),
        "w_eps": jax.random.normal(keys[4], (layer_wid[1], layer_wid[0]), jnp.float32),
        "b_mu":  uni(keys[5], (layer_wid[1],), -0.05, 0.05),
        "b_rho": uni(keys[6], (layer_wid[1],), -2.0, -1.0),
        "b_eps": jax.random.normal(keys[7], (layer_wid[1],), jnp.float32),
    })
    # layer 2: plain nn.Linear(layer_wid[1], layer_wid[2])
    bound2 = 1.0 / jnp.sqrt(layer_wid[1])
    params.append({
        "kind": "dense",
        "W": uni(keys[8], (layer_wid[2], layer_wid[1]), -bound2, bound2),
        "b": uni(keys[9], (layer_wid[2],), -bound2, bound2),
    })

    x = jax.random.normal(keys[10], (batch, input_dim), jnp.float32)

    # BBB weight materialization + casts hoisted out of the forward hot path;
    # reuse `weights`/`biases` across as many forwards as this eps sample needs.
    weights, biases, mxu_dtype = prepare_params(params, bnn_layer_id)

    out = mlp_bbb_forward(x, weights, biases, nonlinearity, mxu_dtype=mxu_dtype)
    out = jax.block_until_ready(out)

    ref = _ref_forward(x, params, nonlinearity)
    assert out.shape == (batch, layer_wid[-1])
    assert jnp.allclose(out, ref, atol=1e-4, rtol=1e-4), "mismatch vs reference"

    print("KERNEL_OK")
</pallas_src>

<mosaic_0001>
module attributes {stable_mosaic.version = 11 : i64} {
  func.func @kernel(%arg0: i32, %arg1: memref<8x16xf32, #tpu.memory_space<vmem>>, %arg2: memref<32x16xf32, #tpu.memory_space<vmem>>, %arg3: memref<1x32xf32, #tpu.memory_space<vmem>>, %arg4: memref<32x32xf32, #tpu.memory_space<vmem>>, %arg5: memref<1x32xf32, #tpu.memory_space<vmem>>, %arg6: memref<8x32xf32, #tpu.memory_space<vmem>>, %arg7: memref<1x8xf32, #tpu.memory_space<vmem>>, %arg8: memref<8x8xf32, #tpu.memory_space<vmem>>) attributes {dimension_semantics = [#tpu.dimension_semantics<parallel>], iteration_bounds = array<i64: 1>, scalar_prefetch = 0 : i64, scratch_operands = 0 : i64, tpu.core_type = #tpu.core_type<tc>, window_params = [{transform_indices = @transform_0, window_bounds = array<i64: 8, 16>}, {pipeline_mode = #tpu.pipeline_mode<synchronous>, transform_indices = @transform_1, window_bounds = array<i64: 32, 16>}, {pipeline_mode = #tpu.pipeline_mode<synchronous>, transform_indices = @transform_2, window_bounds = array<i64: 1, 32>}, {pipeline_mode = #tpu.pipeline_mode<synchronous>, transform_indices = @transform_3, window_bounds = array<i64: 32, 32>}, {pipeline_mode = #tpu.pipeline_mode<synchronous>, transform_indices = @transform_4, window_bounds = array<i64: 1, 32>}, {pipeline_mode = #tpu.pipeline_mode<synchronous>, transform_indices = @transform_5, window_bounds = array<i64: 8, 32>}, {pipeline_mode = #tpu.pipeline_mode<synchronous>, transform_indices = @transform_6, window_bounds = array<i64: 1, 8>}, {transform_indices = @transform_7, window_bounds = array<i64: 8, 8>}]} {
    %c0 = arith.constant 0 : index
    %c0_0 = arith.constant 0 : index
    %0 = vector.load %arg1[%c0, %c0_0] : memref<8x16xf32, #tpu.memory_space<vmem>>, vector<8x16xf32>
    %c0_1 = arith.constant 0 : index
    %c0_2 = arith.constant 0 : index
    %1 = vector.load %arg2[%c0_1, %c0_2] : memref<32x16xf32, #tpu.memory_space<vmem>>, vector<32x16xf32>
    %c0_3 = arith.constant 0 : index
    %c0_4 = arith.constant 0 : index
    %2 = vector.load %arg3[%c0_3, %c0_4] : memref<1x32xf32, #tpu.memory_space<vmem>>, vector<1x32xf32>
    %cst = arith.constant dense<0.000000e+00> : vector<8x32xf32>
    %3 = tpu.matmul %0, %1, %cst {dimension_numbers = #tpu.dot_dimension_numbers<[1], [1], [0], [0], [0, 0, 1, 0], [], []>} : vector<8x16xf32>, vector<32x16xf32>, vector<8x32xf32> -> vector<8x32xf32>
    %4 = vector.broadcast %2 : vector<1x32xf32> to vector<8x32xf32>
    %5 = arith.addf %3, %4 : vector<8x32xf32>
    %cst_5 = arith.constant 0.000000e+00 : f32
    %6 = vector.broadcast %cst_5 : f32 to vector<8x32xf32>
    %7 = arith.maximumf %5, %6 : vector<8x32xf32>
    %c0_6 = arith.constant 0 : index
    %c0_7 = arith.constant 0 : index
    %8 = vector.load %arg4[%c0_6, %c0_7] : memref<32x32xf32, #tpu.memory_space<vmem>>, vector<32x32xf32>
    %c0_8 = arith.constant 0 : index
    %c0_9 = arith.constant 0 : index
    %9 = vector.load %arg5[%c0_8, %c0_9] : memref<1x32xf32, #tpu.memory_space<vmem>>, vector<1x32xf32>
    %cst_10 = arith.constant dense<0.000000e+00> : vector<8x32xf32>
    %10 = tpu.matmul %7, %8, %cst_10 {dimension_numbers = #tpu.dot_dimension_numbers<[1], [1], [0], [0], [0, 0, 1, 0], [], []>} : vector<8x32xf32>, vector<32x32xf32>, vector<8x32xf32> -> vector<8x32xf32>
    %11 = vector.broadcast %9 : vector<1x32xf32> to vector<8x32xf32>
    %12 = arith.addf %10, %11 : vector<8x32xf32>
    %cst_11 = arith.constant 0.000000e+00 : f32
    %13 = vector.broadcast %cst_11 : f32 to vector<8x32xf32>
    %14 = arith.maximumf %12, %13 : vector<8x32xf32>
    %c0_12 = arith.constant 0 : index
    %c0_13 = arith.constant 0 : index
    %15 = vector.load %arg6[%c0_12, %c0_13] : memref<8x32xf32, #tpu.memory_space<vmem>>, vector<8x32xf32>
    %c0_14 = arith.constant 0 : index
    %c0_15 = arith.constant 0 : index
    %16 = vector.load %arg7[%c0_14, %c0_15] : memref<1x8xf32, #tpu.memory_space<vmem>>, vector<1x8xf32>
    %cst_16 = arith.constant dense<0.000000e+00> : vector<8x8xf32>
    %17 = tpu.matmul %14, %15, %cst_16 {dimension_numbers = #tpu.dot_dimension_numbers<[1], [1], [0], [0], [0, 0, 1, 0], [], []>} : vector<8x32xf32>, vector<8x32xf32>, vector<8x8xf32> -> vector<8x8xf32>
    %18 = vector.broadcast %16 : vector<1x8xf32> to vector<8x8xf32>
    %19 = arith.addf %17, %18 : vector<8x8xf32>
    %c0_17 = arith.constant 0 : index
    %c0_18 = arith.constant 0 : index
    %20 = vector.load %arg8[%c0_17, %c0_18] : memref<8x8xf32, #tpu.memory_space<vmem>>, vector<8x8xf32>
    tpu.vector_store %arg8[%c0_17, %c0_18], %19 {strides = array<i32>} : memref<8x8xf32, #tpu.memory_space<vmem>>, vector<8x8xf32>,
    return
  }
  func.func @transform_0(%arg0: i32) -> (i32, i32) {
    %c0_i32 = arith.constant 0 : i32
    %c0_i32_0 = arith.constant 0 : i32
    return %arg0, %c0_i32 : i32, i32
  }
  func.func @transform_1(%arg0: i32) -> (i32, i32) {
    %c0_i32 = arith.constant 0 : i32
    %c0_i32_0 = arith.constant 0 : i32
    %c0_i32_1 = arith.constant 0 : i32
    return %c0_i32, %c0_i32_0 : i32, i32
  }
  func.func @transform_2(%arg0: i32) -> (i32, i32) {
    %c0_i32 = arith.constant 0 : i32
    %c0_i32_0 = arith.constant 0 : i32
    %c0_i32_1 = arith.constant 0 : i32
    return %c0_i32, %c0_i32_0 : i32, i32
  }
  func.func @transform_3(%arg0: i32) -> (i32, i32) {
    %c0_i32 = arith.constant 0 : i32
    %c0_i32_0 = arith.constant 0 : i32
    %c0_i32_1 = arith.constant 0 : i32
    return %c0_i32, %c0_i32_0 : i32, i32
  }
  func.func @transform_4(%arg0: i32) -> (i32, i32) {
    %c0_i32 = arith.constant 0 : i32
    %c0_i32_0 = arith.constant 0 : i32
    %c0_i32_1 = arith.constant 0 : i32
    return %c0_i32, %c0_i32_0 : i32, i32
  }
  func.func @transform_5(%arg0: i32) -> (i32, i32) {
    %c0_i32 = arith.constant 0 : i32
    %c0_i32_0 = arith.constant 0 : i32
    %c0_i32_1 = arith.constant 0 : i32
    return %c0_i32, %c0_i32_0 : i32, i32
  }
  func.func @transform_6(%arg0: i32) -> (i32, i32) {
    %c0_i32 = arith.constant 0 : i32
    %c0_i32_0 = arith.constant 0 : i32
    %c0_i32_1 = arith.constant 0 : i32
    return %c0_i32, %c0_i32_0 : i32, i32
  }
  func.func @transform_7(%arg0: i32) -> (i32, i32) {
    %c0_i32 = arith.constant 0 : i32
    %c0_i32_0 = arith.constant 0 : i32
    return %arg0, %c0_i32 : i32, i32
  }
}

</mosaic_0001>

<llo_original>
// kernel: tpu_custom_call.1
$region0: #{tpu_custom_call.1}
  #allocation0 [shape = 'u32[]', space=smem, size = 0x4, offset = 0x4, fixed_abs, tag = 'smem constant byte address 0x4 - core index']
  #allocation1 [shape = 'u32[144,128]{1,0:T(1,128)}', space=vmem, size = 0x12000, scoped, tag = 'internal scratch']
  %s0 = inlined_call_operand.vmem [shape: f32[8,16], index: 0, kind: input, shape index: {}]
  %s1 = inlined_call_operand.vmem [shape: f32[32,16], index: 1, kind: input, shape index: {}]
  %s2 = inlined_call_operand.vmem [shape: f32[1,32], index: 2, kind: input, shape index: {}]
  %s3 = inlined_call_operand.vmem [shape: f32[32,32], index: 3, kind: input, shape index: {}]
  %s4 = inlined_call_operand.vmem [shape: f32[1,32], index: 4, kind: input, shape index: {}]
  %s5 = inlined_call_operand.vmem [shape: f32[8,32], index: 5, kind: input, shape index: {}]
  %s6 = inlined_call_operand.vmem [shape: f32[1,8], index: 6, kind: input, shape index: {}]
  %s7 = inlined_call_operand.hbm [shape: f32[8,8], index: 7, kind: output, shape index: {}]
  %s8 = sld [smem:[#allocation0]]
  $region38: #{tpu_custom_call.1} parent=0
    _
  %s10 = ssub.s32 1, %s8
  %s11 = scalar_select 0, %s10, %s8
  $region1: #{tpu_custom_call.1} parent=0
    #allocation2 [shape = 'u8[4096]{0}', space=vmem, size = 0x1000, scoped, tag = 'output window, operand 0, single buffered']
    #allocation3 [shape = 's32[1]{0}', space=sflag, size = 0x4, scoped, tag = 'scoped memory for tpu_custom_call.1']
    %12 = vsyncpa [#allocation3], 0
    // Predicated region
    $region2: #{tpu_custom_call.1} parent=1 // pred_check
      _
    $region3: #{tpu_custom_call.1} parent=1 // pred_check_branch
      %14 = sbr.rel (0) target = $region5
    $region4: #{tpu_custom_call.1} parent=1 // pred_region
      _
    $region5: #{tpu_custom_call.1} parent=1 // pred_fallthru
      _
    // Predicated region
    $region6: #{tpu_custom_call.1} parent=1 // pred_check
      _
    $region7: #{tpu_custom_call.1} parent=1 // pred_check_branch
      %16 = sbr.rel (0) target = $region9
    $region8: #{tpu_custom_call.1} parent=1 // pred_region
      _
    $region9: #{tpu_custom_call.1} parent=1 // pred_fallthru
      _
    // Predicated region
    $region10: #{tpu_custom_call.1} parent=1 // pred_check
      _
    $region11: #{tpu_custom_call.1} parent=1 // pred_check_branch
      %18 = sbr.rel (0) target = $region13
    $region12: #{tpu_custom_call.1} parent=1 // pred_region
      _
    $region13: #{tpu_custom_call.1} parent=1 // pred_fallthru
      _
    // Predicated region
    $region14: #{tpu_custom_call.1} parent=1 // pred_check
      _
    $region15: #{tpu_custom_call.1} parent=1 // pred_check_branch
      %20 = sbr.rel (0) target = $region17
    $region16: #{tpu_custom_call.1} parent=1 // pred_region
      _
    $region17: #{tpu_custom_call.1} parent=1 // pred_fallthru
      _
    // Predicated region
    $region18: #{tpu_custom_call.1} parent=1 // pred_check
      _
    $region19: #{tpu_custom_call.1} parent=1 // pred_check_branch
      %22 = sbr.rel (0) target = $region21
    $region20: #{tpu_custom_call.1} parent=1 // pred_region
      _
    $region21: #{tpu_custom_call.1} parent=1 // pred_fallthru
      _
    // Predicated region
    $region22: #{tpu_custom_call.1} parent=1 // pred_check
      _
    $region23: #{tpu_custom_call.1} parent=1 // pred_check_branch
      %24 = sbr.rel (0) target = $region25
    $region24: #{tpu_custom_call.1} parent=1 // pred_region
      _
    $region25: #{tpu_custom_call.1} parent=1 // pred_fallthru
      _
    // Predicated region
    $region26: #{tpu_custom_call.1} parent=1 // pred_check
      _
    $region27: #{tpu_custom_call.1} parent=1 // pred_check_branch
      %26 = sbr.rel (0) target = $region29
    $region28: #{tpu_custom_call.1} parent=1 // pred_region
      _
    $region29: #{tpu_custom_call.1} parent=1 // pred_fallthru
      _
    %v27 = vld [vmem:[%s0] sm:$0xff]
    %v28 = vld [vmem:[%s1] sm:$0xff]
    %v29 = vld [vmem:[%s1 + $0x8] sm:$0xff]
    %v30 = vld [vmem:[%s1 + $0x10] sm:$0xff]
    %v31 = vld [vmem:[%s1 + $0x18] sm:$0xff]
    %v32 = vld [vmem:[%s2] sm:$0x1]
    %v34 = vlaneseq
    %v35 = vshrl.u32 %v34, 7
    %v36 = vsub.s32 0, %v35
    %v37 = vrot.slane %v32, %v36
    %vm39 = vcmask 130048
    %v41 = vsel %vm39, %v27, 0
    %v44 = vsel %vm39, %v28, 0
    %v47 = vsel %vm39, %v29, 0
    %v50 = vsel %vm39, %v30, 0
    %v53 = vsel %vm39, %v31, 0
    %55 = vmatprep.subr.mxu0 0.0
    %56 = vmatpush1.xpose.msra.mxu0 %v44
    %57 = vmatprep.subr.mxu0 0.0
    %58 = vmatpush1.xpose.msra.mxu0 %v47
    %59 = vmatprep.subr.mxu0 0.0
    %60 = vmatpush1.xpose.msra.mxu0 %v50
    %61 = vmatprep.subr.mxu0 0.0
    %62 = vmatpush1.xpose.msra.mxu0 %v53
    %63 = vmatprep.subr.mxu0 0.0
    %64 = vmatpush1.xpose.msra.mxu0 0.0
    %65 = vmatprep.subr.mxu0 0.0
    %66 = vmatpush1.xpose.msra.mxu0 0.0
    %67 = vmatprep.subr.mxu0 0.0
    %68 = vmatpush1.xpose.msra.mxu0 0.0
    %69 = vmatprep.subr.mxu0 0.0
    %70 = vmatpush1.xpose.msra.mxu0 0.0
    %71 = vmatprep.subr.mxu0 0.0
    %72 = vmatpush1.xpose.msra.mxu0 0.0
    %73 = vmatprep.subr.mxu0 0.0
    %74 = vmatpush1.xpose.msra.mxu0 0.0
    %75 = vmatprep.subr.mxu0 0.0
    %76 = vmatpush1.xpose.msra.mxu0 0.0
    %77 = vmatprep.subr.mxu0 0.0
    %78 = vmatpush1.xpose.msra.mxu0 0.0
    %79 = vmatprep.subr.mxu0 0.0
    %80 = vmatpush1.xpose.msra.mxu0 0.0
    %81 = vmatprep.subr.mxu0 0.0
    %82 = vmatpush1.xpose.msra.mxu0 0.0
    %83 = vmatprep.subr.mxu0 0.0
    %84 = vmatpush1.xpose.msra.mxu0 0.0
    %85 = vmatprep.subr.mxu0 0.0
    %86 = vmatpush1.xpose.msra.mxu0 0.0
    %87 = vmatprep.subr.mxu0 0.0
    %88 = vmatpush1.xpose.msra.mxu0 0.0
    %89 = vmatprep.subr.mxu0 0.0
    %90 = vmatpush1.xpose.msra.mxu0 0.0
    %91 = vmatprep.subr.mxu0 0.0
    %92 = vmatpush1.xpose.msra.mxu0 0.0
    %93 = vmatprep.subr.mxu0 0.0
    %94 = vmatpush1.xpose.msra.mxu0 0.0
    %95 = vmatprep.subr.mxu0 0.0
    %96 = vmatpush1.xpose.msra.mxu0 0.0
    %97 = vmatprep.subr.mxu0 0.0
    %98 = vmatpush1.xpose.msra.mxu0 0.0
    %99 = vmatprep.subr.mxu0 0.0
    %100 = vmatpush1.xpose.msra.mxu0 0.0
    %101 = vmatprep.subr.mxu0 0.0
    %102 = vmatpush1.xpose.msra.mxu0 0.0
    %103 = vmatprep.subr.mxu0 0.0
    %104 = vmatpush1.xpose.msra.mxu0 0.0
    %105 = vmatprep.subr.mxu0 0.0
    %106 = vmatpush1.xpose.msra.mxu0 0.0
    %107 = vmatprep.subr.mxu0 0.0
    %108 = vmatpush1.xpose.msra.mxu0 0.0
    %109 = vmatprep.subr.mxu0 0.0
    %110 = vmatpush1.xpose.msra.mxu0 0.0
    %111 = vmatprep.subr.mxu0 0.0
    %112 = vmatpush1.xpose.msra.mxu0 0.0
    %113 = vmatprep.subr.mxu0 0.0
    %114 = vmatpush1.xpose.msra.mxu0 0.0
    %115 = vmatprep.subr.mxu0 0.0
    %116 = vmatpush1.xpose.msra.mxu0 0.0
    %117 = vmatprep.subr.mxu0 0.0
    %118 = vmatpush1.xpose.msra.mxu0 0.0
    %119 = vmatprep.mubr.f32.mxu0 0.0
    %120 = vmatmul.mubr.f32.gmra.mrb[0].mxu0 %v41
    %v121 = vpop.f32.mrb[0].mxu0
    %v122 = vadd.f32 %v37, %v121
    %v123 = vpop.f32.mrb[0].mxu0
    %124 = vdwg.mxu0
    %v125 = vmax.f32 %v122, 0.0
    %v126 = vld [vmem:[%s3] sm:$0xff]
    %v127 = vld [vmem:[%s3 + $0x8] sm:$0xff]
    %v128 = vld [vmem:[%s3 + $0x10] sm:$0xff]
    %v129 = vld [vmem:[%s3 + $0x18] sm:$0xff]
    %v130 = vld [vmem:[%s4] sm:$0x1]
    %v132 = vlaneseq
    %v133 = vshrl.u32 %v132, 7
    %v134 = vsub.s32 0, %v133
    %v135 = vrot.slane %v130, %v134
    %vm137 = vcmask 261120
    %v139 = vsel %vm137, %v125, 0
    %v142 = vsel %vm137, %v126, 0
    %v145 = vsel %vm137, %v127, 0
    %v148 = vsel %vm137, %v128, 0
    %v151 = vsel %vm137, %v129, 0
    %153 = vmatprep.subr.mxu0 0.0
    %154 = vmatpush1.xpose.msra.mxu0 %v142
    %155 = vmatprep.subr.mxu0 0.0
    %156 = vmatpush1.xpose.msra.mxu0 %v145
    %157 = vmatprep.subr.mxu0 0.0
    %158 = vmatpush1.xpose.msra.mxu0 %v148
    %159 = vmatprep.subr.mxu0 0.0
    %160 = vmatpush1.xpose.msra.mxu0 %v151
    %161 = vmatprep.subr.mxu0 0.0
    %162 = vmatpush1.xpose.msra.mxu0 0.0
    %163 = vmatprep.subr.mxu0 0.0
    %164 = vmatpush1.xpose.msra.mxu0 0.0
    %165 = vmatprep.subr.mxu0 0.0
    %166 = vmatpush1.xpose.msra.mxu0 0.0
    %167 = vmatprep.subr.mxu0 0.0
    %168 = vmatpush1.xpose.msra.mxu0 0.0
    %169 = vmatprep.subr.mxu0 0.0
    %170 = vmatpush1.xpose.msra.mxu0 0.0
    %171 = vmatprep.subr.mxu0 0.0
    %172 = vmatpush1.xpose.msra.mxu0 0.0
    %173 = vmatprep.subr.mxu0 0.0
    %174 = vmatpush1.xpose.msra.mxu0 0.0
    %175 = vmatprep.subr.mxu0 0.0
    %176 = vmatpush1.xpose.msra.mxu0 0.0
    %177 = vmatprep.subr.mxu0 0.0
    %178 = vmatpush1.xpose.msra.mxu0 0.0
    %179 = vmatprep.subr.mxu0 0.0
    %180 = vmatpush1.xpose.msra.mxu0 0.0
    %181 = vmatprep.subr.mxu0 0.0
    %182 = vmatpush1.xpose.msra.mxu0 0.0
    %183 = vmatprep.subr.mxu0 0.0
    %184 = vmatpush1.xpose.msra.mxu0 0.0
    %185 = vmatprep.subr.mxu0 0.0
    %186 = vmatpush1.xpose.msra.mxu0 0.0
    %187 = vmatprep.subr.mxu0 0.0
    %188 = vmatpush1.xpose.msra.mxu0 0.0
    %189 = vmatprep.subr.mxu0 0.0
    %190 = vmatpush1.xpose.msra.mxu0 0.0
    %191 = vmatprep.subr.mxu0 0.0
    %192 = vmatpush1.xpose.msra.mxu0 0.0
    %193 = vmatprep.subr.mxu0 0.0
    %194 = vmatpush1.xpose.msra.mxu0 0.0
    %195 = vmatprep.subr.mxu0 0.0
    %196 = vmatpush1.xpose.msra.mxu0 0.0
    %197 = vmatprep.subr.mxu0 0.0
    %198 = vmatpush1.xpose.msra.mxu0 0.0
    %199 = vmatprep.subr.mxu0 0.0
    %200 = vmatpush1.xpose.msra.mxu0 0.0
    %201 = vmatprep.subr.mxu0 0.0
    %202 = vmatpush1.xpose.msra.mxu0 0.0
    %203 = vmatprep.subr.mxu0 0.0
    %204 = vmatpush1.xpose.msra.mxu0 0.0
    %205 = vmatprep.subr.mxu0 0.0
    %206 = vmatpush1.xpose.msra.mxu0 0.0
    %207 = vmatprep.subr.mxu0 0.0
    %208 = vmatpush1.xpose.msra.mxu0 0.0
    %209 = vmatprep.subr.mxu0 0.0
    %210 = vmatpush1.xpose.msra.mxu0 0.0
    %211 = vmatprep.subr.mxu0 0.0
    %212 = vmatpush1.xpose.msra.mxu0 0.0
    %213 = vmatprep.subr.mxu0 0.0
    %214 = vmatpush1.xpose.msra.mxu0 0.0
    %215 = vmatprep.subr.mxu0 0.0
    %216 = vmatpush1.xpose.msra.mxu0 0.0
    %217 = vmatprep.mubr.f32.mxu0 0.0
    %218 = vmatmul.mubr.f32.gmra.mrb[0].mxu0 %v139
    %v219 = vpop.f32.mrb[0].mxu0
    %v220 = vadd.f32 %v135, %v219
    %v221 = vpop.f32.mrb[0].mxu0
    %222 = vdwg.mxu0
    %v223 = vmax.f32 %v220, 0.0
    %v224 = vld [vmem:[%s5] sm:$0xff]
    %v225 = vld [vmem:[%s6] sm:$0x1]
    %v227 = vlaneseq
    %v228 = vshrl.u32 %v227, 7
    %v229 = vsub.s32 0, %v228
    %v230 = vrot.slane %v225, %v229
    %v233 = vsel %vm137, %v223, 0
    %v236 = vsel %vm137, %v224, 0
    %238 = vmatprep.subr.mxu0 0.0
    %239 = vmatpush1.xpose.msra.mxu0 %v236
    %240 = vmatprep.subr.mxu0 0.0
    %241 = vmatpush1.xpose.msra.mxu0 0.0
    %242 = vmatprep.subr.mxu0 0.0
    %243 = vmatpush1.xpose.msra.mxu0 0.0
    %244 = vmatprep.subr.mxu0 0.0
    %245 = vmatpush1.xpose.msra.mxu0 0.0
    %246 = vmatprep.subr.mxu0 0.0
    %247 = vmatpush1.xpose.msra.mxu0 0.0
    %248 = vmatprep.subr.mxu0 0.0
    %249 = vmatpush1.xpose.msra.mxu0 0.0
    %250 = vmatprep.subr.mxu0 0.0
    %251 = vmatpush1.xpose.msra.mxu0 0.0
    %252 = vmatprep.subr.mxu0 0.0
    %253 = vmatpush1.xpose.msra.mxu0 0.0
    %254 = vmatprep.subr.mxu0 0.0
    %255 = vmatpush1.xpose.msra.mxu0 0.0
    %256 = vmatprep.subr.mxu0 0.0
    %257 = vmatpush1.xpose.msra.mxu0 0.0
    %258 = vmatprep.subr.mxu0 0.0
    %259 = vmatpush1.xpose.msra.mxu0 0.0
    %260 = vmatprep.subr.mxu0 0.0
    %261 = vmatpush1.xpose.msra.mxu0 0.0
    %262 = vmatprep.subr.mxu0 0.0
    %263 = vmatpush1.xpose.msra.mxu0 0.0
    %264 = vmatprep.subr.mxu0 0.0
    %265 = vmatpush1.xpose.msra.mxu0 0.0
    %266 = vmatprep.subr.mxu0 0.0
    %267 = vmatpush1.xpose.msra.mxu0 0.0
    %268 = vmatprep.subr.mxu0 0.0
    %269 = vmatpush1.xpose.msra.mxu0 0.0
    %270 = vmatprep.subr.mxu0 0.0
    %271 = vmatpush1.xpose.msra.mxu0 0.0
    %272 = vmatprep.subr.mxu0 0.0
    %273 = vmatpush1.xpose.msra.mxu0 0.0
    %274 = vmatprep.subr.mxu0 0.0
    %275 = vmatpush1.xpose.msra.mxu0 0.0
    %276 = vmatprep.subr.mxu0 0.0
    %277 = vmatpush1.xpose.msra.mxu0 0.0
    %278 = vmatprep.subr.mxu0 0.0
    %279 = vmatpush1.xpose.msra.mxu0 0.0
    %280 = vmatprep.subr.mxu0 0.0
    %281 = vmatpush1.xpose.msra.mxu0 0.0
    %282 = vmatprep.subr.mxu0 0.0
    %283 = vmatpush1.xpose.msra.mxu0 0.0
    %284 = vmatprep.subr.mxu0 0.0
    %285 = vmatpush1.xpose.msra.mxu0 0.0
    %286 = vmatprep.subr.mxu0 0.0
    %287 = vmatpush1.xpose.msra.mxu0 0.0
    %288 = vmatprep.subr.mxu0 0.0
    %289 = vmatpush1.xpose.msra.mxu0 0.0
    %290 = vmatprep.subr.mxu0 0.0
    %291 = vmatpush1.xpose.msra.mxu0 0.0
    %292 = vmatprep.subr.mxu0 0.0
    %293 = vmatpush1.xpose.msra.mxu0 0.0
    %294 = vmatprep.subr.mxu0 0.0
    %295 = vmatpush1.xpose.msra.mxu0 0.0
    %296 = vmatprep.subr.mxu0 0.0
    %297 = vmatpush1.xpose.msra.mxu0 0.0
    %298 = vmatprep.subr.mxu0 0.0
    %299 = vmatpush1.xpose.msra.mxu0 0.0
    %300 = vmatprep.subr.mxu0 0.0
    %301 = vmatpush1.xpose.msra.mxu0 0.0
    %302 = vmatprep.mubr.f32.mxu0 0.0
    %303 = vmatmul.mubr.f32.gmra.mrb[0].mxu0 %v233
    %v304 = vpop.f32.mrb[0].mxu0
    %v305 = vadd.f32 %v230, %v304
    %v306 = vpop.f32.mrb[0].mxu0
    %307 = vdwg.mxu0
    %vm308 = vcmask 64512
    %309 = vst.msk [vmem:[#allocation2] sm:$0xff] %vm308, %v305
    // Predicated region
    $region30: #{tpu_custom_call.1} parent=1 // pred_check
      _
    $region31: #{tpu_custom_call.1} parent=1 // pred_check_branch
      %311 = sbr.rel (0) target = $region33
    $region32: #{tpu_custom_call.1} parent=1 // pred_region
      %s313 = ssub.s32 128, 128
      %314 = vsyncadd [#allocation3], %s313
      %s316 = sshll.u32 [#allocation2], 4
      %s317 = int_to_ptr.vmem [resolvable:$true] %s316
      %319 = dma.vmem_to_hbm [thread:$0]  %s317, 128, %s7, [#allocation3]
    $region33: #{tpu_custom_call.1} parent=1 // pred_fallthru
      _
    // Predicated region
    $region34: #{tpu_custom_call.1} parent=1 // pred_check
      _
    $region35: #{tpu_custom_call.1} parent=1 // pred_check_branch
      %321 = sbr.rel (0) target = $region37
    $region36: #{tpu_custom_call.1} parent=1 // pred_region
      %322 = dma.done [#allocation3], 128
    $region37: #{tpu_custom_call.1} parent=1 // pred_fallthru
      _
    %323 = vsyncpa [#allocation3], 1

</llo_original>
